<compile_context>
chip_gen: v7x
topology: tpu7x:2x2x1
jax: 0.10.0
libtpu: 0.0.40
codegen_flags: <defaults>
</compile_context>

<pallas_src>
import jax
import jax.numpy as jnp
from jax.experimental import pallas as pl
from jax.experimental.pallas import tpu as pltpu

VERY_SMALL_NUMBER = 1e-12


def _round_up(v, m):
    return ((v + m - 1) // m) * m


# ----------------------------------------------------------------------------
# Pass 1: accumulate t = adj^T @ x and col_sum over N tiles; finalize
#         tmp = diag(1/col_sum) @ (t @ W)        -> (A, F_out_pad)
# ----------------------------------------------------------------------------
def _pass1_kernel(adjt_ref, x_ref, w_ref, tmp_ref, t_acc, cs_acc):
    i = pl.program_id(0)

    @pl.when(i == 0)
    def _init():
        t_acc[...] = jnp.zeros_like(t_acc)
        cs_acc[...] = jnp.zeros_like(cs_acc)

    adjt = adjt_ref[...]                                    # (A, tn)   bf16/f32
    x = x_ref[...]                                          # (tn, F_in)

    # MXU: accumulate adj^T @ x over node tiles with f32 accumulation.
    t_acc[...] += jnp.dot(adjt, x, preferred_element_type=jnp.float32)
    # Per-anchor column sums of adj (== lane-reduce of adj^T tile), f32.
    cs_acc[...] += jnp.sum(adjt.astype(jnp.float32), axis=1, keepdims=True)

    @pl.when(i == pl.num_programs(0) - 1)
    def _finalize():
        inv_cs = pl.reciprocal(
            jnp.maximum(cs_acc[...], VERY_SMALL_NUMBER), approx=True)   # (A, 1)
        # Tiny (A, F_in) x (F_in, F_out_pad) matmul, kept in f32 for accuracy.
        tw = jnp.dot(t_acc[...], w_ref[...].astype(jnp.float32),
                     preferred_element_type=jnp.float32)                # (A, F_out_pad)
        tmp_ref[...] = (tw * inv_cs).astype(tmp_ref.dtype)


# ----------------------------------------------------------------------------
# Pass 2: out_tile = diag(1/row_sum_tile) @ (adj_tile @ tmp)
# ----------------------------------------------------------------------------
def _pass2_kernel(adj_ref, tmp_ref, out_ref):
    adj = adj_ref[...]                                      # (tn, A)
    row_sum = jnp.sum(adj.astype(jnp.float32), axis=1, keepdims=True)   # (tn, 1)
    inv_rs = pl.reciprocal(jnp.maximum(row_sum, VERY_SMALL_NUMBER), approx=True)
    prod = jnp.dot(adj, tmp_ref[...], preferred_element_type=jnp.float32)  # (tn, F_out_pad)
    out_ref[...] = (prod * inv_rs).astype(out_ref.dtype)


# ----------------------------------------------------------------------------
# Wrapper
# ----------------------------------------------------------------------------
def anchor_gcn_layer(x, adj, weight, *, tile_n=512, compute_dtype=jnp.bfloat16):
    """AnchorGCNLayer forward (anchor_mp=True path).

    x      : (N, F_in)   float32
    adj    : (N, A)      float32 (non-negative node-anchor adjacency)
    weight : (F_in, F_out)
    returns (N, F_out)   float32
    """
    N, f_in = x.shape
    A = adj.shape[-1]
    f_out = weight.shape[-1]
    assert tile_n % 128 == 0, "tile_n must be a multiple of 128"

    # Lane-dense output: zero-pad F_out to a multiple of 128 lanes (sliced back below).
    f_out_pad = _round_up(max(f_out, 128), 128)
    if f_out_pad != f_out:
        weight = jnp.pad(weight, ((0, 0), (0, f_out_pad - f_out)))

    # Tile over N; zero-pad so the grid divides evenly. Zero rows contribute nothing
    # to the anchor-side reduction and produce zero output rows (sliced off).
    tn = min(tile_n, _round_up(N, 8))
    n_pad = _round_up(N, tn)
    if n_pad != N:
        x = jnp.pad(x, ((0, n_pad - N), (0, 0)))
        adj = jnp.pad(adj, ((0, n_pad - N), (0, 0)))
    n_tiles = n_pad // tn

    # MXU operands in compute_dtype (bf16 by default); f32 accumulation in-kernel.
    xc = x.astype(compute_dtype)
    adjc = adj.astype(compute_dtype)
    adjtc = adjc.T                      # one-time wrapper-side transpose (lane-dense rows)
    wc = weight.astype(compute_dtype)

    # ---- pass 1: reduction over N (grid axis "arbitrary", resident accumulator output)
    tmp = pl.pallas_call(
        _pass1_kernel,
        out_shape=jax.ShapeDtypeStruct((A, f_out_pad), compute_dtype),
        grid_spec=pltpu.PrefetchScalarGridSpec(
            num_scalar_prefetch=0,
            grid=(n_tiles,),
            in_specs=[
                pl.BlockSpec((A, tn), lambda i: (0, i)),             # adj^T tile
                pl.BlockSpec((tn, f_in), lambda i: (i, 0)),          # x tile
                pl.BlockSpec((f_in, f_out_pad), lambda i: (0, 0)),   # W (resident)
            ],
            out_specs=pl.BlockSpec((A, f_out_pad), lambda i: (0, 0)),
            scratch_shapes=[pltpu.VMEM((A, f_in), jnp.float32),      # t = adj^T @ x accumulator
                            pltpu.VMEM((A, 1), jnp.float32)],        # col_sum accumulator
        ),
        compiler_params=pltpu.CompilerParams(
            dimension_semantics=("arbitrary",)),
    )(adjtc, xc, wc)

    # ---- pass 2: independent output tiles (grid axis "parallel" -> megacore on v7x)
    out_pad = pl.pallas_call(
        _pass2_kernel,
        out_shape=jax.ShapeDtypeStruct((n_pad, f_out_pad), jnp.float32),
        grid_spec=pltpu.PrefetchScalarGridSpec(
            num_scalar_prefetch=0,
            grid=(n_tiles,),
            in_specs=[
                pl.BlockSpec((tn, A), lambda i: (i, 0)),             # adj tile
                pl.BlockSpec((A, f_out_pad), lambda i: (0, 0)),      # tmp (resident)
            ],
            out_specs=pl.BlockSpec((tn, f_out_pad), lambda i: (i, 0)),
        ),
        compiler_params=pltpu.CompilerParams(
            dimension_semantics=("parallel",)),
    )(adjc, tmp)

    return out_pad[:N, :f_out]

    # TODO(synk): optional bias add, BatchNorm1d, and the anchor_mp=False branch
    # (plain adj @ support) are disabled module defaults and not implemented here.


# ----------------------------------------------------------------------------
# Pure-JAX reference mirroring the PyTorch forward (anchor_mp=True)
# ----------------------------------------------------------------------------
def anchor_gcn_reference(x, adj, weight):
    support = x @ weight
    node_norm = adj / jnp.clip(jnp.sum(adj, axis=-2, keepdims=True), VERY_SMALL_NUMBER)
    anchor_norm = adj / jnp.clip(jnp.sum(adj, axis=-1, keepdims=True), VERY_SMALL_NUMBER)
    return anchor_norm @ (node_norm.T @ support)


def xavier_uniform(key, fan_in, fan_out, dtype=jnp.float32):
    bound = (6.0 / (fan_in + fan_out)) ** 0.5
    return jax.random.uniform(key, (fan_in, fan_out), dtype=dtype,
                              minval=-bound, maxval=bound)


if __name__ == "__main__":
    # Small but tiling-exercising shapes: N nodes, A anchors, feature dims.
    N, A = 1024, 32
    in_features, out_features = 64, 32

    key = jax.random.PRNGKey(0)
    kx, kadj, kw = jax.random.split(key, 3)

    x = jax.random.normal(kx, (N, in_features), dtype=jnp.float32)
    # Non-negative node-anchor adjacency (like a learned attention/adjacency).
    adj = jax.nn.relu(jax.random.normal(kadj, (N, A), dtype=jnp.float32))
    weight = xavier_uniform(kw, in_features, out_features)

    ref = anchor_gcn_reference(x, adj, weight)
    ref_norm = float(jnp.linalg.norm(ref)) + 1e-30

    # f32-MXU path: validates kernel structure tightly.
    out_f32 = jax.block_until_ready(
        anchor_gcn_layer(x, adj, weight, compute_dtype=jnp.float32))
    assert out_f32.shape == (N, out_features)
    err_f32 = float(jnp.linalg.norm(out_f32 - ref)) / ref_norm
    assert err_f32 < 1e-2, f"f32 path mismatch vs reference: rel err {err_f32}"

    # bf16-MXU path (default, perf-tuned): loose norm-relative check.
    out_bf16 = jax.block_until_ready(anchor_gcn_layer(x, adj, weight))
    assert out_bf16.shape == (N, out_features)
    err_bf16 = float(jnp.linalg.norm(out_bf16 - ref)) / ref_norm
    assert err_bf16 < 5e-2, f"bf16 path mismatch vs reference: rel err {err_bf16}"

    print("KERNEL_OK")
</pallas_src>

<mosaic_0001>
module attributes {stable_mosaic.version = 11 : i64} {
  func.func @_pass1_kernel(%arg0: i32, %arg1: memref<32x512xf32, #tpu.memory_space<vmem>>, %arg2: memref<512x64xf32, #tpu.memory_space<vmem>>, %arg3: memref<64x128xf32, #tpu.memory_space<vmem>>, %arg4: memref<32x128xf32, #tpu.memory_space<vmem>>, %arg5: memref<32x64xf32, #tpu.memory_space<vmem>>, %arg6: memref<32x1xf32, #tpu.memory_space<vmem>>) attributes {dimension_semantics = [#tpu.dimension_semantics<arbitrary>], iteration_bounds = array<i64: 2>, scalar_prefetch = 0 : i64, scratch_operands = 2 : i64, tpu.core_type = #tpu.core_type<tc>, window_params = [{transform_indices = @transform_0, window_bounds = array<i64: 32, 512>}, {transform_indices = @transform_1, window_bounds = array<i64: 512, 64>}, {pipeline_mode = #tpu.pipeline_mode<synchronous>, transform_indices = @transform_2, window_bounds = array<i64: 64, 128>}, {pipeline_mode = #tpu.pipeline_mode<synchronous>, transform_indices = @transform_3, window_bounds = array<i64: 32, 128>}]} {
    %c0_i32 = arith.constant 0 : i32
    %0 = arith.cmpi eq, %arg0, %c0_i32 : i32
    %1 = arith.extui %0 : i1 to i32
    %c0_i32_0 = arith.constant 0 : i32
    %2 = arith.cmpi ne, %1, %c0_i32_0 : i32
    scf.if %2 {
      %cst_14 = arith.constant 0.000000e+00 : f32
      %17 = vector.broadcast %cst_14 : f32 to vector<32x64xf32>
      %c0_15 = arith.constant 0 : index
      %c0_16 = arith.constant 0 : index
      %18 = vector.load %arg5[%c0_15, %c0_16] : memref<32x64xf32, #tpu.memory_space<vmem>>, vector<32x64xf32>
      tpu.vector_store %arg5[%c0_15, %c0_16], %17 {strides = array<i32>} : memref<32x64xf32, #tpu.memory_space<vmem>>, vector<32x64xf32>,
      %cst_17 = arith.constant 0.000000e+00 : f32
      %19 = vector.broadcast %cst_17 : f32 to vector<32x1xf32>
      %c0_18 = arith.constant 0 : index
      %c0_19 = arith.constant 0 : index
      %20 = vector.load %arg6[%c0_18, %c0_19] : memref<32x1xf32, #tpu.memory_space<vmem>>, vector<32x1xf32>
      tpu.vector_store %arg6[%c0_18, %c0_19], %19 {strides = array<i32>} : memref<32x1xf32, #tpu.memory_space<vmem>>, vector<32x1xf32>,
    } else {
    }
    %c0 = arith.constant 0 : index
    %c0_1 = arith.constant 0 : index
    %3 = vector.load %arg1[%c0, %c0_1] : memref<32x512xf32, #tpu.memory_space<vmem>>, vector<32x512xf32>
    %c0_2 = arith.constant 0 : index
    %c0_3 = arith.constant 0 : index
    %4 = vector.load %arg2[%c0_2, %c0_3] : memref<512x64xf32, #tpu.memory_space<vmem>>, vector<512x64xf32>
    %c0_4 = arith.constant 0 : index
    %c0_5 = arith.constant 0 : index
    %5 = vector.load %arg5[%c0_4, %c0_5] : memref<32x64xf32, #tpu.memory_space<vmem>>, vector<32x64xf32>
    %cst = arith.constant dense<0.000000e+00> : vector<32x64xf32>
    %6 = tpu.matmul %3, %4, %cst {dimension_numbers = #tpu.dot_dimension_numbers<[1], [0], [0], [1], [0, 0, 1, 1], [], []>} : vector<32x512xf32>, vector<512x64xf32>, vector<32x64xf32> -> vector<32x64xf32>
    %7 = arith.addf %5, %6 : vector<32x64xf32>
    %c0_6 = arith.constant 0 : index
    %c0_7 = arith.constant 0 : index
    %8 = vector.load %arg5[%c0_6, %c0_7] : memref<32x64xf32, #tpu.memory_space<vmem>>, vector<32x64xf32>
    tpu.vector_store %arg5[%c0_6, %c0_7], %7 {strides = array<i32>} : memref<32x64xf32, #tpu.memory_space<vmem>>, vector<32x64xf32>,
    %c0_8 = arith.constant 0 : index
    %c0_9 = arith.constant 0 : index
    %9 = vector.load %arg6[%c0_8, %c0_9] : memref<32x1xf32, #tpu.memory_space<vmem>>, vector<32x1xf32>
    %cst_10 = arith.constant dense<0.000000e+00> : vector<32xf32>
    %10 = vector.multi_reduction <add>, %3, %cst_10 [1] : vector<32x512xf32> to vector<32xf32>
    %11 = vector.shape_cast %10 : vector<32xf32> to vector<32x1xf32>
    %12 = arith.addf %9, %11 : vector<32x1xf32>
    %c0_11 = arith.constant 0 : index
    %c0_12 = arith.constant 0 : index
    %13 = vector.load %arg6[%c0_11, %c0_12] : memref<32x1xf32, #tpu.memory_space<vmem>>, vector<32x1xf32>
    tpu.vector_store %arg6[%c0_11, %c0_12], %12 {strides = array<i32>} : memref<32x1xf32, #tpu.memory_space<vmem>>, vector<32x1xf32>,
    %c1_i32 = arith.constant 1 : i32
    %14 = arith.cmpi eq, %arg0, %c1_i32 : i32
    %15 = arith.extui %14 : i1 to i32
    %c0_i32_13 = arith.constant 0 : i32
    %16 = arith.cmpi ne, %15, %c0_i32_13 : i32
    scf.if %16 {
      %c0_14 = arith.constant 0 : index
      %c0_15 = arith.constant 0 : index
      %17 = vector.load %arg6[%c0_14, %c0_15] : memref<32x1xf32, #tpu.memory_space<vmem>>, vector<32x1xf32>
      %cst_16 = arith.constant 9.99999996E-13 : f32
      %18 = vector.broadcast %cst_16 : f32 to vector<32x1xf32>
      %19 = arith.maximumf %17, %18 : vector<32x1xf32>
      %20 = tpu.reciprocal %19 {approx = true} : vector<32x1xf32> -> vector<32x1xf32>
      %c0_17 = arith.constant 0 : index
      %c0_18 = arith.constant 0 : index
      %21 = vector.load %arg5[%c0_17, %c0_18] : memref<32x64xf32, #tpu.memory_space<vmem>>, vector<32x64xf32>
      %c0_19 = arith.constant 0 : index
      %c0_20 = arith.constant 0 : index
      %22 = vector.load %arg3[%c0_19, %c0_20] : memref<64x128xf32, #tpu.memory_space<vmem>>, vector<64x128xf32>
      %cst_21 = arith.constant dense<0.000000e+00> : vector<32x128xf32>
      %23 = tpu.matmul %21, %22, %cst_21 {dimension_numbers = #tpu.dot_dimension_numbers<[1], [0], [0], [1], [0, 0, 1, 1], [], []>} : vector<32x64xf32>, vector<64x128xf32>, vector<32x128xf32> -> vector<32x128xf32>
      %24 = vector.broadcast %20 : vector<32x1xf32> to vector<32x128xf32>
      %25 = arith.mulf %23, %24 : vector<32x128xf32>
      %c0_22 = arith.constant 0 : index
      %c0_23 = arith.constant 0 : index
      %26 = vector.load %arg4[%c0_22, %c0_23] : memref<32x128xf32, #tpu.memory_space<vmem>>, vector<32x128xf32>
      tpu.vector_store %arg4[%c0_22, %c0_23], %25 {strides = array<i32>} : memref<32x128xf32, #tpu.memory_space<vmem>>, vector<32x128xf32>,
    } else {
    }
    return
  }
  func.func @transform_0(%arg0: i32) -> (i32, i32) {
    %c0_i32 = arith.constant 0 : i32
    %c0_i32_0 = arith.constant 0 : i32
    return %c0_i32, %arg0 : i32, i32
  }
  func.func @transform_1(%arg0: i32) -> (i32, i32) {
    %c0_i32 = arith.constant 0 : i32
    %c0_i32_0 = arith.constant 0 : i32
    return %arg0, %c0_i32 : i32, i32
  }
  func.func @transform_2(%arg0: i32) -> (i32, i32) {
    %c0_i32 = arith.constant 0 : i32
    %c0_i32_0 = arith.constant 0 : i32
    %c0_i32_1 = arith.constant 0 : i32
    return %c0_i32, %c0_i32_0 : i32, i32
  }
  func.func @transform_3(%arg0: i32) -> (i32, i32) {
    %c0_i32 = arith.constant 0 : i32
    %c0_i32_0 = arith.constant 0 : i32
    %c0_i32_1 = arith.constant 0 : i32
    return %c0_i32, %c0_i32_0 : i32, i32
  }
}

</mosaic_0001>

<llo_original>
// kernel: tpu_custom_call.1
$region0: #{tpu_custom_call.1}
  #allocation0 [shape = 'u32[]', space=smem, size = 0x4, offset = 0x4, fixed_abs, tag = 'smem constant byte address 0x4 - core index']
  #allocation1 [shape = 'u32[144,128]{1,0:T(1,128)}', space=vmem, size = 0x12000, scoped, tag = 'internal scratch']
  #allocation2 [shape = 'f32[32,64]{1,0:T(8,128)}', space=vmem, size = 0x4000, scoped, tag = 'scratch operand']
  #allocation3 [shape = 'f32[32,1]{1,0:T(8,128)}', space=vmem, size = 0x4000, scoped, tag = 'scratch operand']
  %s0 = inlined_call_operand.vmem [shape: f32[32,1024], index: 0, kind: input, shape index: {}]
  %s1 = inlined_call_operand.vmem [shape: f32[1024,64], index: 1, kind: input, shape index: {}]
  %s2 = inlined_call_operand.vmem [shape: f32[64,128], index: 2, kind: input, shape index: {}]
  %s3 = inlined_call_operand.hbm [shape: f32[32,128], index: 3, kind: output, shape index: {}]
  %s4 = sld [smem:[#allocation0]]
  $region76: #{tpu_custom_call.1} parent=0
    _
  %s6 = ssub.s32 1, %s4
  %s7 = scalar_select 0, %s6, %s4
  $region1: #{tpu_custom_call.1} parent=0
    #allocation4 [shape = 'u8[131072]{0}', space=vmem, size = 0x20000, scoped, tag = 'input window, operand 0']
    #allocation5 [shape = 'u8[16384]{0}', space=vmem, size = 0x4000, scoped, tag = 'output window, operand 0, single buffered']
    #allocation6 [shape = 's32[2]{0}', space=sflag, size = 0x8, scoped, tag = 'scoped memory for tpu_custom_call.1']
    %8 = vsyncpa [#allocation6], 0
    loop: start=0, step=1, limit=4
    $region2: #{tpu_custom_call.1} parent=1 // loop_pre_header
      _
    $region3: #{tpu_custom_call.1} parent=1 // loop_header
      %s10 = sphi 0, %s14
      %p11 = scmp.ge.s32.totalorder %s10, 4
      %s20 = sphi 0, %s22
      %s23 = sphi 0, %s20
      %s24 = sphi 0, %s23
      %s40 = sphi 0, %s24
      %s46 = sphi 0, %s48
      %s49 = sphi 0, %s46
      %s50 = sphi 0, %s49
      %s66 = sphi 0, %s50
      %s70 = sphi 0, %s70
      %s72 = sphi 0, %s70
      %s73 = sphi 0, %s72
      %s87 = sphi 0, %s73
      %s91 = sphi 0, %s91
      %s93 = sphi 0, %s91
      %s94 = sphi 0, %s93
      %s108 = sphi 0, %s94
    $region4: #{tpu_custom_call.1} parent=1 // loop_header_branch
      %13 = sbr.rel (%p11) target = $region8
    $region5: #{tpu_custom_call.1} parent=1 // loop_body
      %s15 = ssub.s32 %s10, 1
      %s16 = ssub.s32 %s10, 2
      %s17 = sadd.s32 %s10, 1
      %s18 = ssub.s32 %s10, %s17
      %p19 = scmp.eq.s32.totalorder %s18, 0
      %s21 = sadd.s32 %s20, 1
      %s22 = scalar_select %p19, %s20, %s21
      %p25 = pneg %p19
      %p26 = scmp.eq.s32.totalorder %s10, 1
      %p27 = por %p25, %p26
      %p28 = scmp.ne.s32.totalorder %s20, %s23
      %p29 = scmp.eq.s32.totalorder %s10, 0
      %p30 = por %p28, %p29
      %p31 = scmp.ne.s32.totalorder %s20, %s23
      %p32 = scmp.eq.s32.totalorder %s15, 1
      %p33 = por %p31, %p32
      %p34 = scmp.ne.s32.totalorder %s23, %s24
      %p35 = scmp.eq.s32.totalorder %s15, 0
      %p36 = por %p34, %p35
      %p37 = scmp.ne.s32.totalorder %s23, %s24
      %p38 = scmp.eq.s32.totalorder %s16, 1
      %p39 = por %p37, %p38
      %p41 = scmp.ne.s32.totalorder %s24, %s40
      %p42 = scmp.eq.s32.totalorder %s16, 0
      %p43 = por %p41, %p42
      %s44 = ssub.s32 %s10, %s17
      %p45 = scmp.eq.s32.totalorder %s44, 0
      %s47 = sadd.s32 %s46, 1
      %s48 = scalar_select %p45, %s46, %s47
      %p51 = pneg %p45
      %p52 = scmp.eq.s32.totalorder %s10, 1
      %p53 = por %p51, %p52
      %p54 = scmp.ne.s32.totalorder %s46, %s49
      %p55 = scmp.eq.s32.totalorder %s10, 0
      %p56 = por %p54, %p55
      %p57 = scmp.ne.s32.totalorder %s46, %s49
      %p58 = scmp.eq.s32.totalorder %s15, 1
      %p59 = por %p57, %p58
      %p60 = scmp.ne.s32.totalorder %s49, %s50
      %p61 = scmp.eq.s32.totalorder %s15, 0
      %p62 = por %p60, %p61
      %p63 = scmp.ne.s32.totalorder %s49, %s50
      %p64 = scmp.eq.s32.totalorder %s16, 1
      %p65 = por %p63, %p64
      %p67 = scmp.ne.s32.totalorder %s50, %s66
      %p68 = scmp.eq.s32.totalorder %s16, 0
      %p69 = por %p67, %p68
      %s71 = sadd.s32 %s70, 1
      %p74 = scmp.eq.s32.totalorder %s10, 1
      %p75 = scmp.ne.s32.totalorder %s70, %s72
      %p76 = scmp.eq.s32.totalorder %s10, 0
      %p77 = por %p75, %p76
      %p78 = scmp.ne.s32.totalorder %s70, %s72
      %p79 = scmp.eq.s32.totalorder %s15, 1
      %p80 = por %p78, %p79
      %p81 = scmp.ne.s32.totalorder %s72, %s73
      %p82 = scmp.eq.s32.totalorder %s15, 0
      %p83 = por %p81, %p82
      %p84 = scmp.ne.s32.totalorder %s72, %s73
      %p85 = scmp.eq.s32.totalorder %s16, 1
      %p86 = por %p84, %p85
      %p88 = scmp.ne.s32.totalorder %s73, %s87
      %p89 = scmp.eq.s32.totalorder %s16, 0
      %p90 = por %p88, %p89
      %s92 = sadd.s32 %s91, 1
      %p95 = scmp.eq.s32.totalorder %s10, 1
      %p96 = scmp.ne.s32.totalorder %s91, %s93
      %p97 = scmp.eq.s32.totalorder %s10, 0
      %p98 = por %p96, %p97
      %p99 = scmp.ne.s32.totalorder %s91, %s93
      %p100 = scmp.eq.s32.totalorder %s15, 1
      %p101 = por %p99, %p100
      %p102 = scmp.ne.s32.totalorder %s93, %s94
      %p103 = scmp.eq.s32.totalorder %s15, 0
      %p104 = por %p102, %p103
      %p105 = scmp.ne.s32.totalorder %s93, %s94
      %p106 = scmp.eq.s32.totalorder %s16, 1
      %p107 = por %p105, %p106
      %p109 = scmp.ne.s32.totalorder %s94, %s108
      %p110 = scmp.eq.s32.totalorder %s16, 0
      %p111 = por %p109, %p110
      %p112 = scmp.le.s32.totalorder 1, %s10
      %p113 = scmp.lt.s32.totalorder %s10, 3
      %p114 = pnand %p112, %p113
      %p115 = pneg %p114
      // Predicated region
      $region9: #{tpu_custom_call.1} parent=5 // pred_check
        _
      $region10: #{tpu_custom_call.1} parent=5 // pred_check_branch
        %117 = sbr.rel (%p114) target = $region12
      $region11: #{tpu_custom_call.1} parent=5 // pred_region
        %s118 = ssub.s32 %s10, 1
        // Predicated region
        $region13: #{tpu_custom_call.1} parent=11 // pred_check
          %p119 = pneg %p83
        $region14: #{tpu_custom_call.1} parent=11 // pred_check_branch
          %121 = sbr.rel (%p119) target = $region16
        $region15: #{tpu_custom_call.1} parent=11 // pred_region
          _
        $region16: #{tpu_custom_call.1} parent=11 // pred_fallthru
          _
      $region12: #{tpu_custom_call.1} parent=5 // pred_fallthru
        _
      %p122 = scmp.lt.s32.totalorder %s10, 2
      // Predicated region
      $region17: #{tpu_custom_call.1} parent=5 // pred_check
        %p123 = pneg %p122
      $region18: #{tpu_custom_call.1} parent=5 // pred_check_branch
        %125 = sbr.rel (%p123) target = $region20
      $region19: #{tpu_custom_call.1} parent=5 // pred_region
        // Predicated region
        $region21: #{tpu_custom_call.1} parent=19 // pred_check
          %p126 = pneg %p30
        $region22: #{tpu_custom_call.1} parent=19 // pred_check_branch
          %128 = sbr.rel (%p126) target = $region24
        $region23: #{tpu_custom_call.1} parent=19 // pred_region
          %s129 = sand.u32 %s20, 1
          %s130 = sand.u32 %s20, 1
          %s131 = smul.addr %s130, 128
          %s132 = scalar_lea.vmem [#allocation4], %s131
          %s133 = smul.u32 4, %s10
          %s134 = smul.addr %s133, 8
          %s135 = scalar_lea.vmem %s0, %s134
          // Predicated region
          $region25: #{tpu_custom_call.1} parent=23 // pred_check
            _
          $region26: #{tpu_custom_call.1} parent=23 // pred_check_branch
            %137 = sbr.rel (0) target = $region28
          $region27: #{tpu_custom_call.1} parent=23 // pred_region
            // Predicated region
            $region29: #{tpu_custom_call.1} parent=27 // pred_check
              _
            $region30: #{tpu_custom_call.1} parent=27 // pred_check_branch
              %139 = sbr.rel (0) target = $region32
            $region31: #{tpu_custom_call.1} parent=27 // pred_region
              loop: start=0, step=1, limit=1
              $region33: #{tpu_custom_call.1} parent=31 // loop_pre_header
                _
              $region34: #{tpu_custom_call.1} parent=31 // loop_header
                %s141 = sphi 0, %s145
                %p142 = scmp.ge.s32.totalorder %s141, 1
                %s146 = sphi %s135, %s135
                %s147 = sphi %s132, %s132
              $region35: #{tpu_custom_call.1} parent=31 // loop_header_branch
                %144 = sbr.rel (%p142) target = $region39
              $region36: #{tpu_custom_call.1} parent=31 // loop_body
                %v148 = vld [vmem:[%s146] sm:$0xff]
                %149 = vst [vmem:[%s147] sm:$0xff] %v148
                %v150 = vld [vmem:[%s146 + $0x8] sm:$0xff]
                %151 = vst [vmem:[%s147 + $0x8] sm:$0xff] %v150
                %v152 = vld [vmem:[%s146 + $0x10] sm:$0xff]
                %153 = vst [vmem:[%s147 + $0x10] sm:$0xff] %v152
                %v154 = vld [vmem:[%s146 + $0x18] sm:$0xff]
                %155 = vst [vmem:[%s147 + $0x18] sm:$0xff] %v154
                %v156 = vld [vmem:[%s146 + $0x40] sm:$0xff]
                %157 = vst [vmem:[%s147 + $0x20] sm:$0xff] %v156
                %v158 = vld [vmem:[%s146 + $0x48] sm:$0xff]
                %159 = vst [vmem:[%s147 + $0x28] sm:$0xff] %v158
                %v160 = vld [vmem:[%s146 + $0x50] sm:$0xff]
                %161 = vst [vmem:[%s147 + $0x30] sm:$0xff] %v160
                %v162 = vld [vmem:[%s146 + $0x58] sm:$0xff]
                %163 = vst [vmem:[%s147 + $0x38] sm:$0xff] %v162
                %v164 = vld [vmem:[%s146 + $0x80] sm:$0xff]
                %165 = vst [vmem:[%s147 + $0x40] sm:$0xff] %v164
                %v166 = vld [vmem:[%s146 + $0x88] sm:$0xff]
                %167 = vst [vmem:[%s147 + $0x48] sm:$0xff] %v166
                %v168 = vld [vmem:[%s146 + $0x90] sm:$0xff]
                %169 = vst [vmem:[%s147 + $0x50] sm:$0xff] %v168
                %v170 = vld [vmem:[%s146 + $0x98] sm:$0xff]
                %171 = vst [vmem:[%s147 + $0x58] sm:$0xff] %v170
                %v172 = vld [vmem:[%s146 + $0xc0] sm:$0xff]
                %173 = vst [vmem:[%s147 + $0x60] sm:$0xff] %v172
                %v174 = vld [vmem:[%s146 + $0xc8] sm:$0xff]
                %175 = vst [vmem:[%s147 + $0x68] sm:$0xff] %v174
                %v176 = vld [vmem:[%s146 + $0xd0] sm:$0xff]
                %177 = vst [vmem:[%s147 + $0x70] sm:$0xff] %v176
                %v178 = vld [vmem:[%s146 + $0xd8] sm:$0xff]
                %179 = vst [vmem:[%s147 + $0x78] sm:$0xff] %v178
              $region37: #{tpu_custom_call.1} parent=31 // loop_footer
                %s145 = sadd.s32 1, %s141
              $region38: #{tpu_custom_call.1} parent=31 // loop_footer_branch
                %140 = sbr.rel target = $region34
              $region39: #{tpu_custom_call.1} parent=31 // loop_exit
                _
            $region32: #{tpu_custom_call.1} parent=27 // pred_fallthru
              _
            // Predicated region
            $region40: #{tpu_custom_call.1} parent=27 // pred_check
              _
            $region41: #{tpu_custom_call.1} parent=27 // pred_check_branch
              %181 = sbr.rel target = $region43
            $region42: #{tpu_custom_call.1} parent=27 // pred_region
              _
            $region43: #{tpu_custom_call.1} parent=27 // pred_fallthru
              _
          $region28: #{tpu_custom_call.1} parent=23 // pred_fallthru
            _
          %182 = vnop
        $region24: #{tpu_custom_call.1} parent=19 // pred_fallthru
          _
        // Predicated region
        $region44: #{tpu_custom_call.1} parent=19 // pred_check
          %p183 = pneg %p56
        $region45: #{tpu_custom_call.1} parent=19 // pred_check_branch
          %185 = sbr.rel (%p183) target = $region47
        $region46: #{tpu_custom_call.1} parent=19 // pred_region
          %s186 = smul.u32 64, %s10
          %p187 = scmp.lt.s32.totalorder %s186, 127
          %s188 = scalar_select %p187, %s186, 127
          %s189 = smul.addr %s188, 8
          %s190 = scalar_lea.vmem %s1, %s189
          %s191 = smul.u32 64, %s10
        $region47: #{tpu_custom_call.1} parent=19 // pred_fallthru
          _
      $region20: #{tpu_custom_call.1} parent=5 // pred_fallthru
        _
      %p192 = scmp.le.s32.totalorder 1, %s10
      %p193 = scmp.lt.s32.totalorder %s10, 3
      %p194 = pnand %p192, %p193
      %p195 = pneg %p194
      // Predicated region
      $region48: #{tpu_custom_call.1} parent=5 // pred_check
        _
      $region49: #{tpu_custom_call.1} parent=5 // pred_check_branch
        %197 = sbr.rel (%p194) target = $region51
      $region50: #{tpu_custom_call.1} parent=5 // pred_region
        %s198 = ssub.s32 %s10, 1
        %s199 = sand.u32 %s23, 1
        %s200 = sand.u32 %s23, 1
        %s201 = smul.addr %s200, 128
        %s202 = scalar_lea.vmem [#allocation4], %s201
        // Predicated region
        $region52: #{tpu_custom_call.1} parent=50 // pred_check
          %p203 = pneg %p36
        $region53: #{tpu_custom_call.1} parent=50 // pred_check_branch
          %205 = sbr.rel (%p203) target = $region55
        $region54: #{tpu_custom_call.1} parent=50 // pred_region
          _
        $region55: #{tpu_custom_call.1} parent=50 // pred_fallthru
          _
        %s206 = sand.u32 %s23, 1
        %s207 = sand.u32 %s23, 1
        %s208 = smul.addr %s207, 128
        %s209 = scalar_lea.vmem [#allocation4], %s208
        %p210 = pneg %p36
        %p211 = pneg %p33
        %s212 = smul.u32 64, %s15
        %p213 = scmp.lt.s32.totalorder %s212, 127
        %s214 = scalar_select %p213, %s212, 127
        %s215 = smul.addr %s214, 8
        %s216 = scalar_lea.vmem %s1, %s215
        %p217 = pneg %p62
        %p218 = pneg %p59
        %p219 = pneg %p83
        %p220 = pneg %p80
        %p221 = pneg %p104
        %p222 = pneg %p101
        %s223 = smul.u32 4, %s15
        %s224 = smul.u32 64, %s15
        %p225 = scmp.lt.s32.totalorder %s224, 127
        %s226 = scalar_select %p225, %s224, 127
        %s227 = smul.addr %s226, 8
        %s228 = scalar_lea.vmem %s1, %s227
        %s229 = smul.u32 64, %s15
        %p230 = scmp.eq.s32.totalorder %s15, 0
        // Predicated region
        $region56: #{tpu_custom_call.1} parent=50 // pred_check
          %p231 = pneg %p230
        $region57: #{tpu_custom_call.1} parent=50 // pred_check_branch
          %233 = sbr.rel (%p231) target = $region59
        $region58: #{tpu_custom_call.1} parent=50 // pred_region
          %vm234 = vcmask 523264
          %235 = vst.msk [vmem:[#allocation2] sm:$0xff] %vm234, 0.0
          %236 = vst.msk [vmem:[#allocation2 + $0x8] sm:$0xff] %vm234, 0.0
          %237 = vst.msk [vmem:[#allocation2 + $0x10] sm:$0xff] %vm234, 0.0
          %238 = vst.msk [vmem:[#allocation2 + $0x18] sm:$0xff] %vm234, 0.0
          %vm239 = vcmask 7168
          %240 = vst.msk [vmem:[#allocation3] sm:$0xff] %vm239, 0.0
          %241 = vst.msk [vmem:[#allocation3 + $0x8] sm:$0xff] %vm239, 0.0
          %242 = vst.msk [vmem:[#allocation3 + $0x10] sm:$0xff] %vm239, 0.0
          %243 = vst.msk [vmem:[#allocation3 + $0x18] sm:$0xff] %vm239, 0.0
        $region59: #{tpu_custom_call.1} parent=50 // pred_fallthru
          _
        %v244 = vld [vmem:[%s202] sm:$0xff]
        %v245 = vld [vmem:[%s202 + $0x8] sm:$0xff]
        %v246 = vld [vmem:[%s202 + $0x10] sm:$0xff]
        %v247 = vld [vmem:[%s202 + $0x18] sm:$0xff]
        %v248 = vld [vmem:[%s202 + $0x20] sm:$0xff]
        %v249 = vld [vmem:[%s202 + $0x28] sm:$0xff]
        %v250 = vld [vmem:[%s202 + $0x30] sm:$0xff]
        %v251 = vld [vmem:[%s202 + $0x38] sm:$0xff]
        %v252 = vld [vmem:[%s202 + $0x40] sm:$0xff]
        %v253 = vld [vmem:[%s202 + $0x48] sm:$0xff]
        %v254 = vld [vmem:[%s202 + $0x50] sm:$0xff]
        %v255 = vld [vmem:[%s202 + $0x58] sm:$0xff]
        %v256 = vld [vmem:[%s202 + $0x60] sm:$0xff]
        %v257 = vld [vmem:[%s202 + $0x68] sm:$0xff]
        %v258 = vld [vmem:[%s202 + $0x70] sm:$0xff]
        %v259 = vld [vmem:[%s202 + $0x78] sm:$0xff]
        %v260 = vld [vmem:[%s228] sm:$0xff]
        %v261 = vld [vmem:[%s228 + $0x8] sm:$0xff]
        %v262 = vld [vmem:[%s228 + $0x10] sm:$0xff]
        %v263 = vld [vmem:[%s228 + $0x18] sm:$0xff]
        %v264 = vld [vmem:[%s228 + $0x20] sm:$0xff]
        %v265 = vld [vmem:[%s228 + $0x28] sm:$0xff]
        %v266 = vld [vmem:[%s228 + $0x30] sm:$0xff]
        %v267 = vld [vmem:[%s228 + $0x38] sm:$0xff]
        %v268 = vld [vmem:[%s228 + $0x40] sm:$0xff]
        %v269 = vld [vmem:[%s228 + $0x48] sm:$0xff]
        %v270 = vld [vmem:[%s228 + $0x50] sm:$0xff]
        %v271 = vld [vmem:[%s228 + $0x58] sm:$0xff]
        %v272 = vld [vmem:[%s228 + $0x60] sm:$0xff]
        %v273 = vld [vmem:[%s228 + $0x68] sm:$0xff]
        %v274 = vld [vmem:[%s228 + $0x70] sm:$0xff]
        %v275 = vld [vmem:[%s228 + $0x78] sm:$0xff]
        %v276 = vld [vmem:[%s228 + $0x80] sm:$0xff]
        %v277 = vld [vmem:[%s228 + $0x88] sm:$0xff]
        %v278 = vld [vmem:[%s228 + $0x90] sm:$0xff]
        %v279 = vld [vmem:[%s228 + $0x98] sm:$0xff]
        %v280 = vld [vmem:[%s228 + $0xa0] sm:$0xff]
        %v281 = vld [vmem:[%s228 + $0xa8] sm:$0xff]
        %v282 = vld [vmem:[%s228 + $0xb0] sm:$0xff]
        %v283 = vld [vmem:[%s228 + $0xb8] sm:$0xff]
        %v284 = vld [vmem:[%s228 + $0xc0] sm:$0xff]
        %v285 = vld [vmem:[%s228 + $0xc8] sm:$0xff]
        %v286 = vld [vmem:[%s228 + $0xd0] sm:$0xff]
        %v287 = vld [vmem:[%s228 + $0xd8] sm:$0xff]
        %v288 = vld [vmem:[%s228 + $0xe0] sm:$0xff]
        %v289 = vld [vmem:[%s228 + $0xe8] sm:$0xff]
        %v290 = vld [vmem:[%s228 + $0xf0] sm:$0xff]
        %v291 = vld [vmem:[%s228 + $0xf8] sm:$0xff]
        %v292 = vld [vmem:[%s228 + $0x100] sm:$0xff]
        %v293 = vld [vmem:[%s228 + $0x108] sm:$0xff]
        %v294 = vld [vmem:[%s228 + $0x110] sm:$0xff]
        %v295 = vld [vmem:[%s228 + $0x118] sm:$0xff]
        %v296 = vld [vmem:[%s228 + $0x120] sm:$0xff]
        %v297 = vld [vmem:[%s228 + $0x128] sm:$0xff]
        %v298 = vld [vmem:[%s228 + $0x130] sm:$0xff]
        %v299 = vld [vmem:[%s228 + $0x138] sm:$0xff]
        %v300 = vld [vmem:[%s228 + $0x140] sm:$0xff]
        %v301 = vld [vmem:[%s228 + $0x148] sm:$0xff]
        %v302 = vld [vmem:[%s228 + $0x150] sm:$0xff]
        %v303 = vld [vmem:[%s228 + $0x158] sm:$0xff]
        %v304 = vld [vmem:[%s228 + $0x160] sm:$0xff]
        %v305 = vld [vmem:[%s228 + $0x168] sm:$0xff]
        %v306 = vld [vmem:[%s228 + $0x170] sm:$0xff]
        %v307 = vld [vmem:[%s228 + $0x178] sm:$0xff]
        %v308 = vld [vmem:[%s228 + $0x180] sm:$0xff]
        %v309 = vld [vmem:[%s228 + $0x188] sm:$0xff]
        %v310 = vld [vmem:[%s228 + $0x190] sm:$0xff]
        %v311 = vld [vmem:[%s228 + $0x198] sm:$0xff]
        %v312 = vld [vmem:[%s228 + $0x1a0] sm:$0xff]
        %v313 = vld [vmem:[%s228 + $0x1a8] sm:$0xff]
        %v314 = vld [vmem:[%s228 + $0x1b0] sm:$0xff]
        %v315 = vld [vmem:[%s228 + $0x1b8] sm:$0xff]
        %v316 = vld [vmem:[%s228 + $0x1c0] sm:$0xff]
        %v317 = vld [vmem:[%s228 + $0x1c8] sm:$0xff]
        %v318 = vld [vmem:[%s228 + $0x1d0] sm:$0xff]
        %v319 = vld [vmem:[%s228 + $0x1d8] sm:$0xff]
        %v320 = vld [vmem:[%s228 + $0x1e0] sm:$0xff]
        %v321 = vld [vmem:[%s228 + $0x1e8] sm:$0xff]
        %v322 = vld [vmem:[%s228 + $0x1f0] sm:$0xff]
        %v323 = vld [vmem:[%s228 + $0x1f8] sm:$0xff]
        %v324 = vld [vmem:[#allocation2] sm:$0xff]
        %v325 = vld [vmem:[#allocation2 + $0x8] sm:$0xff]
        %v326 = vld [vmem:[#allocation2 + $0x10] sm:$0xff]
        %v327 = vld [vmem:[#allocation2 + $0x18] sm:$0xff]
        %328 = vmatprep.subr.mxu0 0.0
        %329 = vmatpush1.msra.mxu0 %v260
        %330 = vmatprep.subr.mxu0 0.0
        %331 = vmatpush1.msra.mxu0 %v261
        %332 = vmatprep.subr.mxu0 0.0
        %333 = vmatpush1.msra.mxu0 %v262
        %334 = vmatprep.subr.mxu0 0.0
        %335 = vmatpush1.msra.mxu0 %v263
        %336 = vmatprep.subr.mxu0 0.0
        %337 = vmatpush1.msra.mxu0 %v264
        %338 = vmatprep.subr.mxu0 0.0
        %339 = vmatpush1.msra.mxu0 %v265
        %340 = vmatprep.subr.mxu0 0.0
        %341 = vmatpush1.msra.mxu0 %v266
        %342 = vmatprep.subr.mxu0 0.0
        %343 = vmatpush1.msra.mxu0 %v267
        %344 = vmatprep.subr.mxu0 0.0
        %345 = vmatpush1.msra.mxu0 %v268
        %346 = vmatprep.subr.mxu0 0.0
        %347 = vmatpush1.msra.mxu0 %v269
        %348 = vmatprep.subr.mxu0 0.0
        %349 = vmatpush1.msra.mxu0 %v270
        %350 = vmatprep.subr.mxu0 0.0
        %351 = vmatpush1.msra.mxu0 %v271
        %352 = vmatprep.subr.mxu0 0.0
        %353 = vmatpush1.msra.mxu0 %v272
        %354 = vmatprep.subr.mxu0 0.0
        %355 = vmatpush1.msra.mxu0 %v273
        %356 = vmatprep.subr.mxu0 0.0
        %357 = vmatpush1.msra.mxu0 %v274
        %358 = vmatprep.subr.mxu0 0.0
        %359 = vmatpush1.msra.mxu0 %v275
        %360 = vmatprep.subr.mxu0 0.0
        %361 = vmatpush1.msra.mxu0 %v276
        %362 = vmatprep.subr.mxu0 0.0
        %363 = vmatpush1.msra.mxu0 %v277
        %364 = vmatprep.subr.mxu0 0.0
        %365 = vmatpush1.msra.mxu0 %v278
        %366 = vmatprep.subr.mxu0 0.0
        %367 = vmatpush1.msra.mxu0 %v279
        %368 = vmatprep.subr.mxu0 0.0
        %369 = vmatpush1.msra.mxu0 %v280
        %370 = vmatprep.subr.mxu0 0.0
        %371 = vmatpush1.msra.mxu0 %v281
        %372 = vmatprep.subr.mxu0 0.0
        %373 = vmatpush1.msra.mxu0 %v282
        %374 = vmatprep.subr.mxu0 0.0
        %375 = vmatpush1.msra.mxu0 %v283
        %376 = vmatprep.subr.mxu0 0.0
        %377 = vmatpush1.msra.mxu0 %v284
        %378 = vmatprep.subr.mxu0 0.0
        %379 = vmatpush1.msra.mxu0 %v285
        %380 = vmatprep.subr.mxu0 0.0
        %381 = vmatpush1.msra.mxu0 %v286
        %382 = vmatprep.subr.mxu0 0.0
        %383 = vmatpush1.msra.mxu0 %v287
        %384 = vmatprep.subr.mxu0 0.0
        %385 = vmatpush1.msra.mxu0 %v288
        %386 = vmatprep.subr.mxu0 0.0
        %387 = vmatpush1.msra.mxu0 %v289
        %388 = vmatprep.subr.mxu0 0.0
        %389 = vmatpush1.msra.mxu0 %v290
        %390 = vmatprep.subr.mxu0 0.0
        %391 = vmatpush1.msra.mxu0 %v291
        %392 = vmatprep.mubr.f32.mxu0 %v245
        %393 = vmatmul.mubr.f32.gmra.mrb[0].mxu0 %v244
        %v394 = vpop.f32.mrb[0].mxu0
        %v395 = vadd.f32 0.0, %v394
        %v396 = vpop.f32.mrb[0].mxu0
        %397 = vmatprep.mubr.f32.mxu0 %v249
        %398 = vmatmul.mubr.f32.gmra.mrb[0].mxu0 %v248
        %v399 = vpop.f32.mrb[0].mxu0
        %v400 = vadd.f32 0.0, %v399
        %v401 = vpop.f32.mrb[0].mxu0
        %402 = vmatprep.mubr.f32.mxu0 %v253
        %403 = vmatmul.mubr.f32.gmra.mrb[0].mxu0 %v252
        %v404 = vpop.f32.mrb[0].mxu0
        %v405 = vadd.f32 0.0, %v404
        %v406 = vpop.f32.mrb[0].mxu0
        %407 = vmatprep.mubr.f32.mxu0 %v257
        %408 = vmatmul.mubr.f32.gmra.mrb[0].mxu0 %v256
        %v409 = vpop.f32.mrb[0].mxu0
        %v410 = vadd.f32 0.0, %v409
        %v411 = vpop.f32.mrb[0].mxu0
        %412 = vdwg.mxu0
        %413 = vmatprep.subr.mxu0 0.0
        %414 = vmatpush1.msra.mxu0 %v292
        %415 = vmatprep.subr.mxu0 0.0
        %416 = vmatpush1.msra.mxu0 %v293
        %417 = vmatprep.subr.mxu0 0.0
        %418 = vmatpush1.msra.mxu0 %v294
        %419 = vmatprep.subr.mxu0 0.0
        %420 = vmatpush1.msra.mxu0 %v295
        %421 = vmatprep.subr.mxu0 0.0
        %422 = vmatpush1.msra.mxu0 %v296
        %423 = vmatprep.subr.mxu0 0.0
        %424 = vmatpush1.msra.mxu0 %v297
        %425 = vmatprep.subr.mxu0 0.0
        %426 = vmatpush1.msra.mxu0 %v298
        %427 = vmatprep.subr.mxu0 0.0
        %428 = vmatpush1.msra.mxu0 %v299
        %429 = vmatprep.subr.mxu0 0.0
        %430 = vmatpush1.msra.mxu0 %v300
        %431 = vmatprep.subr.mxu0 0.0
        %432 = vmatpush1.msra.mxu0 %v301
        %433 = vmatprep.subr.mxu0 0.0
        %434 = vmatpush1.msra.mxu0 %v302
        %435 = vmatprep.subr.mxu0 0.0
        %436 = vmatpush1.msra.mxu0 %v303
        %437 = vmatprep.subr.mxu0 0.0
        %438 = vmatpush1.msra.mxu0 %v304
        %439 = vmatprep.subr.mxu0 0.0
        %440 = vmatpush1.msra.mxu0 %v305
        %441 = vmatprep.subr.mxu0 0.0
        %442 = vmatpush1.msra.mxu0 %v306
        %443 = vmatprep.subr.mxu0 0.0
        %444 = vmatpush1.msra.mxu0 %v307
        %445 = vmatprep.subr.mxu0 0.0
        %446 = vmatpush1.msra.mxu0 %v308
        %447 = vmatprep.subr.mxu0 0.0
        %448 = vmatpush1.msra.mxu0 %v309
        %449 = vmatprep.subr.mxu0 0.0
        %450 = vmatpush1.msra.mxu0 %v310
        %451 = vmatprep.subr.mxu0 0.0
        %452 = vmatpush1.msra.mxu0 %v311
        %453 = vmatprep.subr.mxu0 0.0
        %454 = vmatpush1.msra.mxu0 %v312
        %455 = vmatprep.subr.mxu0 0.0
        %456 = vmatpush1.msra.mxu0 %v313
        %457 = vmatprep.subr.mxu0 0.0
        %458 = vmatpush1.msra.mxu0 %v314
        %459 = vmatprep.subr.mxu0 0.0
        %460 = vmatpush1.msra.mxu0 %v315
        %461 = vmatprep.subr.mxu0 0.0
        %462 = vmatpush1.msra.mxu0 %v316
        %463 = vmatprep.subr.mxu0 0.0
        %464 = vmatpush1.msra.mxu0 %v317
        %465 = vmatprep.subr.mxu0 0.0
        %466 = vmatpush1.msra.mxu0 %v318
        %467 = vmatprep.subr.mxu0 0.0
        %468 = vmatpush1.msra.mxu0 %v319
        %469 = vmatprep.subr.mxu0 0.0
        %470 = vmatpush1.msra.mxu0 %v320
        %471 = vmatprep.subr.mxu0 0.0
        %472 = vmatpush1.msra.mxu0 %v321
        %473 = vmatprep.subr.mxu0 0.0
        %474 = vmatpush1.msra.mxu0 %v322
        %475 = vmatprep.subr.mxu0 0.0
        %476 = vmatpush1.msra.mxu0 %v323
        %477 = vmatprep.mubr.f32.mxu0 %v247
        %478 = vmatmul.mubr.f32.gmra.mrb[0].mxu0 %v246
        %v479 = vpop.f32.mrb[0].mxu0
        %v480 = vadd.f32 %v395, %v479
        %v481 = vpop.f32.mrb[0].mxu0
        %482 = vmatprep.mubr.f32.mxu0 %v251
        %483 = vmatmul.mubr.f32.gmra.mrb[0].mxu0 %v250
        %v484 = vpop.f32.mrb[0].mxu0
        %v485 = vadd.f32 %v400, %v484
        %v486 = vpop.f32.mrb[0].mxu0
        %487 = vmatprep.mubr.f32.mxu0 %v255
        %488 = vmatmul.mubr.f32.gmra.mrb[0].mxu0 %v254
        %v489 = vpop.f32.mrb[0].mxu0
        %v490 = vadd.f32 %v405, %v489
        %v491 = vpop.f32.mrb[0].mxu0
        %492 = vmatprep.mubr.f32.mxu0 %v259
        %493 = vmatmul.mubr.f32.gmra.mrb[0].mxu0 %v258
        %v494 = vpop.f32.mrb[0].mxu0
        %v495 = vadd.f32 %v410, %v494
        %v496 = vpop.f32.mrb[0].mxu0
        %497 = vdwg.mxu0
        %v498 = vadd.f32 %v324, %v480
        %v499 = vadd.f32 %v325, %v485
        %v500 = vadd.f32 %v326, %v490
        %v501 = vadd.f32 %v327, %v495
        %vm502 = vcmask 523264
        %503 = vst.msk [vmem:[#allocation2] sm:$0xff] %vm502, %v498
        %504 = vst.msk [vmem:[#allocation2 + $0x8] sm:$0xff] %vm502, %v499
        %505 = vst.msk [vmem:[#allocation2 + $0x10] sm:$0xff] %vm502, %v500
        %506 = vst.msk [vmem:[#allocation2 + $0x18] sm:$0xff] %vm502, %v501
        %v507 = vld [vmem:[#allocation3] sm:$0xff]
        %v508 = vld [vmem:[#allocation3 + $0x8] sm:$0xff]
        %v509 = vld [vmem:[#allocation3 + $0x10] sm:$0xff]
        %v510 = vld [vmem:[#allocation3 + $0x18] sm:$0xff]
        %v511 = vadd.f32 %v244, %v245
        %v512 = vadd.f32 %v511, %v246
        %v513 = vadd.f32 %v512, %v247
        %514 = vadd.xlane.f32.xlu0 %v513
        %v515 = vpop.xlane.xlu0 %514
        %v516 = vadd.f32 %v248, %v249
        %v517 = vadd.f32 %v516, %v250
        %v518 = vadd.f32 %v517, %v251
        %519 = vadd.xlane.f32.xlu0 %v518
        %v520 = vpop.xlane.xlu0 %519
        %v521 = vadd.f32 %v252, %v253
        %v522 = vadd.f32 %v521, %v254
        %v523 = vadd.f32 %v522, %v255
        %524 = vadd.xlane.f32.xlu0 %v523
        %v525 = vpop.xlane.xlu0 %524
        %v526 = vadd.f32 %v256, %v257
        %v527 = vadd.f32 %v526, %v258
        %v528 = vadd.f32 %v527, %v259
        %529 = vadd.xlane.f32.xlu0 %v528
        %v530 = vpop.xlane.xlu0 %529
        %v531 = vadd.f32 %v507, %v515
        %v532 = vadd.f32 %v508, %v520
        %v533 = vadd.f32 %v509, %v525
        %v534 = vadd.f32 %v510, %v530
        %vm535 = vcmask 7168
        %536 = vst.msk [vmem:[#allocation3] sm:$0xff] %vm535, %v531
        %537 = vst.msk [vmem:[#allocation3 + $0x8] sm:$0xff] %vm535, %v532
        %538 = vst.msk [vmem:[#allocation3 + $0x10] sm:$0xff] %vm535, %v533
        %539 = vst.msk [vmem:[#allocation3 + $0x18] sm:$0xff] %vm535, %v534
        %p540 = scmp.eq.s32.totalorder %s15, 1
        // Predicated region
        $region60: #{tpu_custom_call.1} parent=50 // pred_check
          %p541 = pneg %p540
        $region61: #{tpu_custom_call.1} parent=50 // pred_check_branch
          %543 = sbr.rel (%p541) target = $region63
        $region62: #{tpu_custom_call.1} parent=50 // pred_region
          %v544 = vld [vmem:[#allocation3] sm:$0xff]
          %v545 = vld [vmem:[#allocation3 + $0x8] sm:$0xff]
          %v546 = vld [vmem:[#allocation3 + $0x10] sm:$0xff]
          %v547 = vld [vmem:[#allocation3 + $0x18] sm:$0xff]
          %v548 = vmax.f32 %v544, 1e-12
          %v549 = vmax.f32 %v545, 1e-12
          %v550 = vmax.f32 %v546, 1e-12
          %v551 = vmax.f32 %v547, 1e-12
          %v552 = vrcp.pop %v548
          %v553 = vrcp.pop %v549
          %v554 = vrcp.pop %v550
          %v555 = vrcp.pop %v551
          %v556 = vld [vmem:[#allocation2] sm:$0xff]
          %v557 = vld [vmem:[#allocation2 + $0x8] sm:$0xff]
          %v558 = vld [vmem:[#allocation2 + $0x10] sm:$0xff]
          %v559 = vld [vmem:[#allocation2 + $0x18] sm:$0xff]
          %v560 = vld [vmem:[%s2] sm:$0xff]
          %v561 = vld [vmem:[%s2 + $0x8] sm:$0xff]
          %v562 = vld [vmem:[%s2 + $0x10] sm:$0xff]
          %v563 = vld [vmem:[%s2 + $0x18] sm:$0xff]
          %v564 = vld [vmem:[%s2 + $0x20] sm:$0xff]
          %v565 = vld [vmem:[%s2 + $0x28] sm:$0xff]
          %v566 = vld [vmem:[%s2 + $0x30] sm:$0xff]
          %v567 = vld [vmem:[%s2 + $0x38] sm:$0xff]
          %v569 = vsel %vm502, %v556, 0
          %v572 = vsel %vm502, %v557, 0
          %v575 = vsel %vm502, %v558, 0
          %v578 = vsel %vm502, %v559, 0
          %580 = vmatprep.subr.mxu0 0.0
          %581 = vmatpush1.msra.mxu0 %v560
          %582 = vmatprep.subr.mxu0 0.0
          %583 = vmatpush1.msra.mxu0 %v561
          %584 = vmatprep.subr.mxu0 0.0
          %585 = vmatpush1.msra.mxu0 %v562
          %586 = vmatprep.subr.mxu0 0.0
          %587 = vmatpush1.msra.mxu0 %v563
          %588 = vmatprep.subr.mxu0 0.0
          %589 = vmatpush1.msra.mxu0 %v564
          %590 = vmatprep.subr.mxu0 0.0
          %591 = vmatpush1.msra.mxu0 %v565
          %592 = vmatprep.subr.mxu0 0.0
          %593 = vmatpush1.msra.mxu0 %v566
          %594 = vmatprep.subr.mxu0 0.0
          %595 = vmatpush1.msra.mxu0 %v567
          %596 = vmatprep.subr.mxu0 0.0
          %597 = vmatpush1.msra.mxu0 0.0
          %598 = vmatprep.subr.mxu0 0.0
          %599 = vmatpush1.msra.mxu0 0.0
          %600 = vmatprep.subr.mxu0 0.0
          %601 = vmatpush1.msra.mxu0 0.0
          %602 = vmatprep.subr.mxu0 0.0
          %603 = vmatpush1.msra.mxu0 0.0
          %604 = vmatprep.subr.mxu0 0.0
          %605 = vmatpush1.msra.mxu0 0.0
          %606 = vmatprep.subr.mxu0 0.0
          %607 = vmatpush1.msra.mxu0 0.0
          %608 = vmatprep.subr.mxu0 0.0
          %609 = vmatpush1.msra.mxu0 0.0
          %610 = vmatprep.subr.mxu0 0.0
          %611 = vmatpush1.msra.mxu0 0.0
          %612 = vmatprep.subr.mxu0 0.0
          %613 = vmatpush1.msra.mxu0 0.0
          %614 = vmatprep.subr.mxu0 0.0
          %615 = vmatpush1.msra.mxu0 0.0
          %616 = vmatprep.subr.mxu0 0.0
          %617 = vmatpush1.msra.mxu0 0.0
          %618 = vmatprep.subr.mxu0 0.0
          %619 = vmatpush1.msra.mxu0 0.0
          %620 = vmatprep.subr.mxu0 0.0
          %621 = vmatpush1.msra.mxu0 0.0
          %622 = vmatprep.subr.mxu0 0.0
          %623 = vmatpush1.msra.mxu0 0.0
          %624 = vmatprep.subr.mxu0 0.0
          %625 = vmatpush1.msra.mxu0 0.0
          %626 = vmatprep.subr.mxu0 0.0
          %627 = vmatpush1.msra.mxu0 0.0
          %628 = vmatprep.subr.mxu0 0.0
          %629 = vmatpush1.msra.mxu0 0.0
          %630 = vmatprep.subr.mxu0 0.0
          %631 = vmatpush1.msra.mxu0 0.0
          %632 = vmatprep.subr.mxu0 0.0
          %633 = vmatpush1.msra.mxu0 0.0
          %634 = vmatprep.subr.mxu0 0.0
          %635 = vmatpush1.msra.mxu0 0.0
          %636 = vmatprep.subr.mxu0 0.0
          %637 = vmatpush1.msra.mxu0 0.0
          %638 = vmatprep.subr.mxu0 0.0
          %639 = vmatpush1.msra.mxu0 0.0
          %640 = vmatprep.subr.mxu0 0.0
          %641 = vmatpush1.msra.mxu0 0.0
          %642 = vmatprep.subr.mxu0 0.0
          %643 = vmatpush1.msra.mxu0 0.0
          %644 = vmatprep.mubr.f32.mxu0 0.0
          %645 = vmatmul.mubr.f32.gmra.mrb[0].mxu0 %v569
          %v646 = vpop.f32.mrb[0].mxu0
          %v647 = vadd.f32 0.0, %v646
          %v648 = vpop.f32.mrb[0].mxu0
          %649 = vmatprep.mubr.f32.mxu0 0.0
          %650 = vmatmul.mubr.f32.gmra.mrb[0].mxu0 %v572
          %v651 = vpop.f32.mrb[0].mxu0
          %v652 = vadd.f32 0.0, %v651
          %v653 = vpop.f32.mrb[0].mxu0
          %654 = vmatprep.mubr.f32.mxu0 0.0
          %655 = vmatmul.mubr.f32.gmra.mrb[0].mxu0 %v575
          %v656 = vpop.f32.mrb[0].mxu0
          %v657 = vadd.f32 0.0, %v656
          %v658 = vpop.f32.mrb[0].mxu0
          %659 = vmatprep.mubr.f32.mxu0 0.0
          %660 = vmatmul.mubr.f32.gmra.mrb[0].mxu0 %v578
          %v661 = vpop.f32.mrb[0].mxu0
          %v662 = vadd.f32 0.0, %v661
          %v663 = vpop.f32.mrb[0].mxu0
          %664 = vdwg.mxu0
          %666 = vset.pattern.permute.xlu0 0
          %667 = vperm.xlu0 %666, %v552
          %v668 = vpop.permute.xlu0 %667
          %671 = vset.pattern.permute.xlu0 0
          %672 = vperm.xlu0 %671, %v553
          %v673 = vpop.permute.xlu0 %672
          %676 = vset.pattern.permute.xlu0 0
          %677 = vperm.xlu0 %676, %v554
          %v678 = vpop.permute.xlu0 %677
          %681 = vset.pattern.permute.xlu0 0
          %682 = vperm.xlu0 %681, %v555
          %v683 = vpop.permute.xlu0 %682
          %v685 = vmul.f32 %v647, %v668
          %v686 = vmul.f32 %v652, %v673
          %v687 = vmul.f32 %v657, %v678
          %v688 = vmul.f32 %v662, %v683
          %689 = vst [vmem:[#allocation5] sm:$0xff] %v685
          %690 = vst [vmem:[#allocation5 + $0x8] sm:$0xff] %v686
          %691 = vst [vmem:[#allocation5 + $0x10] sm:$0xff] %v687
          %692 = vst [vmem:[#allocation5 + $0x18] sm:$0xff] %v688
        $region63: #{tpu_custom_call.1} parent=50 // pred_fallthru
          _
        // Predicated region
        $region64: #{tpu_custom_call.1} parent=50 // pred_check
          %p693 = pneg %p101
        $region65: #{tpu_custom_call.1} parent=50 // pred_check_branch
          %695 = sbr.rel (%p693) target = $region67
        $region66: #{tpu_custom_call.1} parent=50 // pred_region
          %s697 = ssub.s32 512, 512
          %698 = vsyncadd [#allocation6], %s697
          %s699 = sshll.u32 [#allocation5], 4
          %s700 = int_to_ptr.vmem [resolvable:$true] %s699
          %705 = dma.vmem_to_hbm [thread:$0]  %s700, 512, %s3, [#allocation6], 128, 128, 8
        $region67: #{tpu_custom_call.1} parent=50 // pred_fallthru
          _
        // Predicated region
        $region68: #{tpu_custom_call.1} parent=50 // pred_check
          %p706 = pneg %p101
        $region69: #{tpu_custom_call.1} parent=50 // pred_check_branch
          %708 = sbr.rel (%p706) target = $region71
        $region70: #{tpu_custom_call.1} parent=50 // pred_region
          %709 = dma.done [#allocation6], 512
        $region71: #{tpu_custom_call.1} parent=50 // pred_fallthru
          _
      $region51: #{tpu_custom_call.1} parent=5 // pred_fallthru
        _
      %p710 = scmp.le.s32.totalorder 2, %s10
      // Predicated region
      $region72: #{tpu_custom_call.1} parent=5 // pred_check
        %p711 = pneg %p710
      $region73: #{tpu_custom_call.1} parent=5 // pred_check_branch
        %713 = sbr.rel (%p711) target = $region75
      $region74: #{tpu_custom_call.1} parent=5 // pred_region
        %s714 = ssub.s32 %s10, 2
      $region75: #{tpu_custom_call.1} parent=5 // pred_fallthru
        _
    $region6: #{tpu_custom_call.1} parent=1 // loop_footer
      %s14 = sadd.s32 1, %s10
    $region7: #{tpu_custom_call.1} parent=1 // loop_footer_branch
      %9 = sbr.rel target = $region3
    $region8: #{tpu_custom_call.1} parent=1 // loop_exit
      _
    %715 = vsyncpa [#allocation6], 1
    %s716 = scalar_lea.sflag [#allocation6], 1
    %717 = vsyncpa %s716, 1

</llo_original>
